<compile_context>
chip_gen: v6e
topology: v6e:2x2x1
jax: 0.10.0
libtpu: 0.0.40
codegen_flags: <defaults>
</compile_context>

<pallas_src>
import functools

import jax
import jax.numpy as jnp
from jax.experimental import pallas as pl
from jax.experimental.pallas import tpu as pltpu


def _semantic_grouping_kernel(slot_ref, x_ref, slots_ref, dots_ref, *,
                              temp: float, eps: float):
    # slot_ref:  (K, D)      raw slot embeddings (shared across batch)
    # x_ref:     (B, D, N)   features, N = H*W on the lane axis
    # slots_ref: (B, K, D)   output slots
    # dots_ref:  (B, K, N)   output cosine similarities (lane-dense over N)
    s = slot_ref[...]                                            # (K, D)

    # F.normalize(v, dim): v / max(||v||, 1e-12) == v * rsqrt(max(||v||^2, 1e-24))
    s_n = s * jax.lax.rsqrt(
        jnp.maximum(jnp.sum(s * s, axis=-1, keepdims=True), 1e-24))

    bb = x_ref.shape[0]
    inv_temp = 1.0 / temp

    # bb is tiny and static -> fully unrolled; each iteration is two plain
    # 2-D MXU matmuls, no broadcast temporaries, no batched dot_general.
    for b in range(bb):
        x_b = x_ref[b]                                           # (D, N)

        # Raw dots on the MXU (lhs contracts its last dim -> natural push);
        # the per-position inverse norm is applied after the contraction.
        dots_raw = jnp.dot(s_n, x_b,
                           preferred_element_type=jnp.float32)   # (K, N)
        inv_nx = jax.lax.rsqrt(
            jnp.maximum(jnp.sum(x_b * x_b, axis=0, keepdims=True), 1e-24))
        dots = dots_raw * inv_nx                                 # (K, N)

        # softmax over the slot axis K (sublanes), then + eps.
        logits = dots * inv_temp
        m = jnp.max(logits, axis=0, keepdims=True)
        e = jnp.exp(logits - m)
        attn = e / jnp.sum(e, axis=0, keepdims=True) + eps       # (K, N)  exact divide

        # per-slot renormalization over all N spatial positions (exact divide,
        # the denominator is a single (K, 1) column).
        w = attn / jnp.sum(attn, axis=-1, keepdims=True)         # (K, N)

        # slots[k, d] = sum_n w[k, n] * x[d, n]
        # Contract-last on both operands (A @ B^T pattern) -> no relayout of x.
        slots_b = jax.lax.dot_general(
            w, x_b,
            dimension_numbers=(((1,), (1,)), ((), ())),
            preferred_element_type=jnp.float32)                  # (K, D)

        dots_ref[b] = dots
        slots_ref[b] = slots_b


def semantic_grouping(x_nchw, slot_embed, *, temp=0.07, eps=1e-6):
    """x_nchw: (B, D, H, W) float32, slot_embed: (K, D) float32.

    Returns (slots, dots) with slots (B, K, D) and dots (B, K, H, W),
    matching the PyTorch module's forward.
    """
    B, D, H, W = x_nchw.shape
    K, Ds = slot_embed.shape
    assert Ds == D
    N = H * W

    # Free reshape: N = H*W is already the fast axis of NCHW (no HBM transpose).
    x_bdn = x_nchw.reshape(B, D, N)

    kernel = functools.partial(_semantic_grouping_kernel, temp=temp, eps=eps)

    # Single grid step everywhere: total input is ~B*D*N*4 bytes (128 KiB at
    # these shapes), so extra grid steps only add fixed pipeline overhead.
    # TODO(synk): if H*W or D ever scale up, tile N with a VMEM slots
    # accumulator (pl.when init/finalize, axis "arbitrary") and size tiles
    # against v7x's 64 MiB VMEM, not v5e/v6e's 128 MiB.
    slots_out, dots_bkn = pl.pallas_call(
        kernel,
        out_shape=(
            jax.ShapeDtypeStruct((B, K, D), jnp.float32),
            jax.ShapeDtypeStruct((B, K, N), jnp.float32),
        ),
        grid_spec=pltpu.PrefetchScalarGridSpec(
            num_scalar_prefetch=0,
            grid=(1,),
            in_specs=[
                pl.BlockSpec((K, D), lambda g: (0, 0)),          # slot embeddings
                pl.BlockSpec((B, D, N), lambda g: (0, 0, 0)),    # features
            ],
            out_specs=[
                pl.BlockSpec((B, K, D), lambda g: (0, 0, 0)),
                pl.BlockSpec((B, K, N), lambda g: (0, 0, 0)),
            ],
        ),
        compiler_params=pltpu.CompilerParams(
            dimension_semantics=("arbitrary",)),
    )(slot_embed, x_bdn)

    # Free reshape: (B, K, N) -> (B, K, H, W), no transpose.
    dots = dots_bkn.reshape(B, K, H, W)
    return slots_out, dots


def semantic_grouping_ref(x_nchw, slot_embed, *, temp=0.07, eps=1e-6):
    """Pure-JAX reference mirroring the PyTorch forward."""
    B = x_nchw.shape[0]

    def l2norm(v, axis):
        n = jnp.sqrt(jnp.sum(v * v, axis=axis, keepdims=True))
        return v / jnp.maximum(n, 1e-12)

    slots = jnp.broadcast_to(slot_embed[None], (B,) + slot_embed.shape)
    dots = jnp.einsum('bkd,bdhw->bkhw', l2norm(slots, 2), l2norm(x_nchw, 1))
    logits = dots / temp
    attn = jax.nn.softmax(logits, axis=1) + eps
    attn_n = attn / jnp.sum(attn, axis=(2, 3), keepdims=True)
    slots_out = jnp.einsum('bdhw,bkhw->bkd', x_nchw, attn_n)
    return slots_out, dots


if __name__ == "__main__":
    # SemanticGrouping(num_slots=8, dim_slot=64), input x: (B=2, D=64, H=16, W=16)
    num_slots, dim_slot = 8, 64
    B, H, W = 2, 16, 16

    key = jax.random.PRNGKey(0)
    k_x, k_slot = jax.random.split(key)
    x = jax.random.normal(k_x, (B, dim_slot, H, W), dtype=jnp.float32)
    # nn.Embedding default init: N(0, 1)
    slot_embed = jax.random.normal(k_slot, (num_slots, dim_slot), dtype=jnp.float32)

    slots, dots = semantic_grouping(x, slot_embed)
    jax.block_until_ready((slots, dots))

    slots_ref, dots_ref = semantic_grouping_ref(x, slot_embed)
    assert slots.shape == (B, num_slots, dim_slot)
    assert dots.shape == (B, num_slots, H, W)
    # All normalizations are exact now; remaining differences are only MXU
    # accumulation-order / precision effects vs. the XLA reference einsums.
    assert jnp.allclose(dots, dots_ref, atol=1e-4, rtol=1e-4)
    assert jnp.allclose(slots, slots_ref, atol=2e-3, rtol=2e-3)

    print("KERNEL_OK")
</pallas_src>

<mosaic_0001>
module attributes {stable_mosaic.version = 11 : i64} {
  func.func @_semantic_grouping_kernel(%arg0: i32, %arg1: memref<8x64xf32, #tpu.memory_space<vmem>>, %arg2: memref<2x64x256xf32, #tpu.memory_space<vmem>>, %arg3: memref<2x8x64xf32, #tpu.memory_space<vmem>>, %arg4: memref<2x8x256xf32, #tpu.memory_space<vmem>>) attributes {dimension_semantics = [#tpu.dimension_semantics<arbitrary>], iteration_bounds = array<i64: 1>, scalar_prefetch = 0 : i64, scratch_operands = 0 : i64, tpu.core_type = #tpu.core_type<tc>, window_params = [{pipeline_mode = #tpu.pipeline_mode<synchronous>, transform_indices = @transform_0, window_bounds = array<i64: 8, 64>}, {pipeline_mode = #tpu.pipeline_mode<synchronous>, transform_indices = @transform_1, window_bounds = array<i64: 2, 64, 256>}, {pipeline_mode = #tpu.pipeline_mode<synchronous>, transform_indices = @transform_2, window_bounds = array<i64: 2, 8, 64>}, {pipeline_mode = #tpu.pipeline_mode<synchronous>, transform_indices = @transform_3, window_bounds = array<i64: 2, 8, 256>}]} {
    %c0 = arith.constant 0 : index
    %c0_0 = arith.constant 0 : index
    %0 = vector.load %arg1[%c0, %c0_0] : memref<8x64xf32, #tpu.memory_space<vmem>>, vector<8x64xf32>
    %1 = arith.mulf %0, %0 : vector<8x64xf32>
    %cst = arith.constant dense<0.000000e+00> : vector<8xf32>
    %2 = vector.multi_reduction <add>, %1, %cst [1] : vector<8x64xf32> to vector<8xf32>
    %3 = vector.shape_cast %2 : vector<8xf32> to vector<8x1xf32>
    %cst_1 = arith.constant 1.000000e-24 : f32
    %4 = vector.broadcast %cst_1 : f32 to vector<8x1xf32>
    %5 = arith.maximumf %3, %4 : vector<8x1xf32>
    %6 = math.rsqrt %5 : vector<8x1xf32>
    %7 = vector.broadcast %6 : vector<8x1xf32> to vector<8x64xf32>
    %8 = arith.mulf %0, %7 : vector<8x64xf32>
    %c0_2 = arith.constant 0 : index
    %c0_3 = arith.constant 0 : index
    %c0_4 = arith.constant 0 : index
    %9 = vector.load %arg2[%c0_2, %c0_3, %c0_4] : memref<2x64x256xf32, #tpu.memory_space<vmem>>, vector<1x64x256xf32>
    %10 = vector.shape_cast %9 : vector<1x64x256xf32> to vector<64x256xf32>
    %cst_5 = arith.constant dense<0.000000e+00> : vector<8x256xf32>
    %11 = tpu.matmul %8, %10, %cst_5 {dimension_numbers = #tpu.dot_dimension_numbers<[1], [0], [0], [1], [0, 0, 1, 1], [], []>} : vector<8x64xf32>, vector<64x256xf32>, vector<8x256xf32> -> vector<8x256xf32>
    %12 = arith.mulf %10, %10 : vector<64x256xf32>
    %cst_6 = arith.constant dense<0.000000e+00> : vector<256xf32>
    %13 = vector.multi_reduction <add>, %12, %cst_6 [0] : vector<64x256xf32> to vector<256xf32>
    %14 = vector.shape_cast %13 : vector<256xf32> to vector<1x256xf32>
    %cst_7 = arith.constant 1.000000e-24 : f32
    %15 = vector.broadcast %cst_7 : f32 to vector<1x256xf32>
    %16 = arith.maximumf %14, %15 : vector<1x256xf32>
    %17 = math.rsqrt %16 : vector<1x256xf32>
    %18 = vector.broadcast %17 : vector<1x256xf32> to vector<8x256xf32>
    %19 = arith.mulf %11, %18 : vector<8x256xf32>
    %cst_8 = arith.constant 14.2857141 : f32
    %20 = vector.broadcast %cst_8 : f32 to vector<8x256xf32>
    %21 = arith.mulf %19, %20 : vector<8x256xf32>
    %cst_9 = arith.constant dense<0xFF800000> : vector<256xf32>
    %22 = vector.multi_reduction <maximumf>, %21, %cst_9 [0] : vector<8x256xf32> to vector<256xf32>
    %23 = vector.shape_cast %22 : vector<256xf32> to vector<1x256xf32>
    %24 = vector.broadcast %23 : vector<1x256xf32> to vector<8x256xf32>
    %25 = arith.subf %21, %24 : vector<8x256xf32>
    %26 = math.exp %25 : vector<8x256xf32>
    %cst_10 = arith.constant dense<0.000000e+00> : vector<256xf32>
    %27 = vector.multi_reduction <add>, %26, %cst_10 [0] : vector<8x256xf32> to vector<256xf32>
    %28 = vector.shape_cast %27 : vector<256xf32> to vector<1x256xf32>
    %29 = vector.broadcast %28 : vector<1x256xf32> to vector<8x256xf32>
    %30 = arith.divf %26, %29 : vector<8x256xf32>
    %cst_11 = arith.constant 9.99999997E-7 : f32
    %31 = vector.broadcast %cst_11 : f32 to vector<8x256xf32>
    %32 = arith.addf %30, %31 : vector<8x256xf32>
    %cst_12 = arith.constant dense<0.000000e+00> : vector<8xf32>
    %33 = vector.multi_reduction <add>, %32, %cst_12 [1] : vector<8x256xf32> to vector<8xf32>
    %34 = vector.shape_cast %33 : vector<8xf32> to vector<8x1xf32>
    %35 = vector.broadcast %34 : vector<8x1xf32> to vector<8x256xf32>
    %36 = arith.divf %32, %35 : vector<8x256xf32>
    %cst_13 = arith.constant dense<0.000000e+00> : vector<8x64xf32>
    %37 = tpu.matmul %36, %10, %cst_13 {dimension_numbers = #tpu.dot_dimension_numbers<[1], [1], [0], [0], [0, 0, 1, 0], [], []>} : vector<8x256xf32>, vector<64x256xf32>, vector<8x64xf32> -> vector<8x64xf32>
    %c0_14 = arith.constant 0 : index
    %c0_15 = arith.constant 0 : index
    %c0_16 = arith.constant 0 : index
    %38 = vector.load %arg4[%c0_14, %c0_15, %c0_16] : memref<2x8x256xf32, #tpu.memory_space<vmem>>, vector<1x8x256xf32>
    %39 = vector.shape_cast %38 : vector<1x8x256xf32> to vector<8x256xf32>
    %40 = vector.shape_cast %19 : vector<8x256xf32> to vector<1x8x256xf32>
    tpu.vector_store %arg4[%c0_14, %c0_15, %c0_16], %40 {strides = array<i32>} : memref<2x8x256xf32, #tpu.memory_space<vmem>>, vector<1x8x256xf32>,
    %c0_17 = arith.constant 0 : index
    %c0_18 = arith.constant 0 : index
    %c0_19 = arith.constant 0 : index
    %41 = vector.load %arg3[%c0_17, %c0_18, %c0_19] : memref<2x8x64xf32, #tpu.memory_space<vmem>>, vector<1x8x64xf32>
    %42 = vector.shape_cast %41 : vector<1x8x64xf32> to vector<8x64xf32>
    %43 = vector.shape_cast %37 : vector<8x64xf32> to vector<1x8x64xf32>
    tpu.vector_store %arg3[%c0_17, %c0_18, %c0_19], %43 {strides = array<i32>} : memref<2x8x64xf32, #tpu.memory_space<vmem>>, vector<1x8x64xf32>,
    %c1 = arith.constant 1 : index
    %c0_20 = arith.constant 0 : index
    %c0_21 = arith.constant 0 : index
    %44 = vector.load %arg2[%c1, %c0_20, %c0_21] : memref<2x64x256xf32, #tpu.memory_space<vmem>>, vector<1x64x256xf32>
    %45 = vector.shape_cast %44 : vector<1x64x256xf32> to vector<64x256xf32>
    %cst_22 = arith.constant dense<0.000000e+00> : vector<8x256xf32>
    %46 = tpu.matmul %8, %45, %cst_22 {dimension_numbers = #tpu.dot_dimension_numbers<[1], [0], [0], [1], [0, 0, 1, 1], [], []>} : vector<8x64xf32>, vector<64x256xf32>, vector<8x256xf32> -> vector<8x256xf32>
    %47 = arith.mulf %45, %45 : vector<64x256xf32>
    %cst_23 = arith.constant dense<0.000000e+00> : vector<256xf32>
    %48 = vector.multi_reduction <add>, %47, %cst_23 [0] : vector<64x256xf32> to vector<256xf32>
    %49 = vector.shape_cast %48 : vector<256xf32> to vector<1x256xf32>
    %cst_24 = arith.constant 1.000000e-24 : f32
    %50 = vector.broadcast %cst_24 : f32 to vector<1x256xf32>
    %51 = arith.maximumf %49, %50 : vector<1x256xf32>
    %52 = math.rsqrt %51 : vector<1x256xf32>
    %53 = vector.broadcast %52 : vector<1x256xf32> to vector<8x256xf32>
    %54 = arith.mulf %46, %53 : vector<8x256xf32>
    %cst_25 = arith.constant 14.2857141 : f32
    %55 = vector.broadcast %cst_25 : f32 to vector<8x256xf32>
    %56 = arith.mulf %54, %55 : vector<8x256xf32>
    %cst_26 = arith.constant dense<0xFF800000> : vector<256xf32>
    %57 = vector.multi_reduction <maximumf>, %56, %cst_26 [0] : vector<8x256xf32> to vector<256xf32>
    %58 = vector.shape_cast %57 : vector<256xf32> to vector<1x256xf32>
    %59 = vector.broadcast %58 : vector<1x256xf32> to vector<8x256xf32>
    %60 = arith.subf %56, %59 : vector<8x256xf32>
    %61 = math.exp %60 : vector<8x256xf32>
    %cst_27 = arith.constant dense<0.000000e+00> : vector<256xf32>
    %62 = vector.multi_reduction <add>, %61, %cst_27 [0] : vector<8x256xf32> to vector<256xf32>
    %63 = vector.shape_cast %62 : vector<256xf32> to vector<1x256xf32>
    %64 = vector.broadcast %63 : vector<1x256xf32> to vector<8x256xf32>
    %65 = arith.divf %61, %64 : vector<8x256xf32>
    %cst_28 = arith.constant 9.99999997E-7 : f32
    %66 = vector.broadcast %cst_28 : f32 to vector<8x256xf32>
    %67 = arith.addf %65, %66 : vector<8x256xf32>
    %cst_29 = arith.constant dense<0.000000e+00> : vector<8xf32>
    %68 = vector.multi_reduction <add>, %67, %cst_29 [1] : vector<8x256xf32> to vector<8xf32>
    %69 = vector.shape_cast %68 : vector<8xf32> to vector<8x1xf32>
    %70 = vector.broadcast %69 : vector<8x1xf32> to vector<8x256xf32>
    %71 = arith.divf %67, %70 : vector<8x256xf32>
    %cst_30 = arith.constant dense<0.000000e+00> : vector<8x64xf32>
    %72 = tpu.matmul %71, %45, %cst_30 {dimension_numbers = #tpu.dot_dimension_numbers<[1], [1], [0], [0], [0, 0, 1, 0], [], []>} : vector<8x256xf32>, vector<64x256xf32>, vector<8x64xf32> -> vector<8x64xf32>
    %c1_31 = arith.constant 1 : index
    %c0_32 = arith.constant 0 : index
    %c0_33 = arith.constant 0 : index
    %73 = vector.load %arg4[%c1_31, %c0_32, %c0_33] : memref<2x8x256xf32, #tpu.memory_space<vmem>>, vector<1x8x256xf32>
    %74 = vector.shape_cast %73 : vector<1x8x256xf32> to vector<8x256xf32>
    %75 = vector.shape_cast %54 : vector<8x256xf32> to vector<1x8x256xf32>
    tpu.vector_store %arg4[%c1_31, %c0_32, %c0_33], %75 {strides = array<i32>} : memref<2x8x256xf32, #tpu.memory_space<vmem>>, vector<1x8x256xf32>,
    %c1_34 = arith.constant 1 : index
    %c0_35 = arith.constant 0 : index
    %c0_36 = arith.constant 0 : index
    %76 = vector.load %arg3[%c1_34, %c0_35, %c0_36] : memref<2x8x64xf32, #tpu.memory_space<vmem>>, vector<1x8x64xf32>
    %77 = vector.shape_cast %76 : vector<1x8x64xf32> to vector<8x64xf32>
    %78 = vector.shape_cast %72 : vector<8x64xf32> to vector<1x8x64xf32>
    tpu.vector_store %arg3[%c1_34, %c0_35, %c0_36], %78 {strides = array<i32>} : memref<2x8x64xf32, #tpu.memory_space<vmem>>, vector<1x8x64xf32>,
    return
  }
  func.func @transform_0(%arg0: i32) -> (i32, i32) {
    %c0_i32 = arith.constant 0 : i32
    %c0_i32_0 = arith.constant 0 : i32
    %c0_i32_1 = arith.constant 0 : i32
    return %c0_i32, %c0_i32_0 : i32, i32
  }
  func.func @transform_1(%arg0: i32) -> (i32, i32, i32) {
    %c0_i32 = arith.constant 0 : i32
    %c0_i32_0 = arith.constant 0 : i32
    %c0_i32_1 = arith.constant 0 : i32
    %c0_i32_2 = arith.constant 0 : i32
    return %c0_i32, %c0_i32_0, %c0_i32_1 : i32, i32, i32
  }
  func.func @transform_2(%arg0: i32) -> (i32, i32, i32) {
    %c0_i32 = arith.constant 0 : i32
    %c0_i32_0 = arith.constant 0 : i32
    %c0_i32_1 = arith.constant 0 : i32
    %c0_i32_2 = arith.constant 0 : i32
    return %c0_i32, %c0_i32_0, %c0_i32_1 : i32, i32, i32
  }
  func.func @transform_3(%arg0: i32) -> (i32, i32, i32) {
    %c0_i32 = arith.constant 0 : i32
    %c0_i32_0 = arith.constant 0 : i32
    %c0_i32_1 = arith.constant 0 : i32
    %c0_i32_2 = arith.constant 0 : i32
    return %c0_i32, %c0_i32_0, %c0_i32_1 : i32, i32, i32
  }
}

</mosaic_0001>

<llo_original>
// kernel: tpu_custom_call.1
$region0: #{tpu_custom_call.1}
  #allocation0 [shape = 'u32[]', space=smem, size = 0x4, offset = 0x4, fixed_abs, tag = 'smem constant byte address 0x4 - core index']
  #allocation1 [shape = 'u32[144,128]{1,0:T(1,128)}', space=vmem, size = 0x12000, scoped, tag = 'internal scratch']
  %s0 = inlined_call_operand.hbm [shape: f32[8,64], index: 0, kind: input, shape index: {}]
  %s1 = inlined_call_operand.hbm [shape: f32[2,64,256], index: 1, kind: input, shape index: {}]
  %s2 = inlined_call_operand.hbm [shape: f32[2,8,64], index: 2, kind: output, shape index: {0}]
  %s3 = inlined_call_operand.hbm [shape: f32[2,8,256], index: 3, kind: output, shape index: {1}]
  %4 = xla_tuple %s2, %s3
  %s5 = sld [smem:[#allocation0]]
  $region34: #{tpu_custom_call.1} parent=0
    _
  %s7 = ssub.s32 1, %s5
  %s8 = scalar_select 0, %s7, %s5
  $region1: #{tpu_custom_call.1} parent=0
    #allocation2 [shape = 'u8[4096]{0}', space=vmem, size = 0x1000, scoped, tag = 'input window, operand 0, single buffered']
    #allocation3 [shape = 's32[1]{0}', space=sflag, size = 0x4, scoped, tag = 'scoped memory for tpu_custom_call.1']
    #allocation4 [shape = 's32[1]{0}', space=sflag, size = 0x4, scoped, tag = 'scoped memory for tpu_custom_call.1']
    #allocation5 [shape = 'u8[131072]{0}', space=vmem, size = 0x20000, scoped, tag = 'input window, operand 1, single buffered']
    #allocation6 [shape = 's32[1]{0}', space=sflag, size = 0x4, scoped, tag = 'scoped memory for tpu_custom_call.1']
    #allocation7 [shape = 'u8[8192]{0}', space=vmem, size = 0x2000, scoped, tag = 'output window, operand 0, single buffered']
    #allocation8 [shape = 'u8[16384]{0}', space=vmem, size = 0x4000, scoped, tag = 'output window, operand 1, single buffered']
    #allocation9 [shape = 's32[1]{0}', space=sflag, size = 0x4, scoped, tag = 'scoped memory for tpu_custom_call.1']
    %9 = vsyncpa [#allocation3], 0
    %10 = vsyncpa [#allocation6], 0
    %11 = vsyncpa [#allocation4], 0
    %12 = vsyncpa [#allocation9], 0
    // Predicated region
    $region2: #{tpu_custom_call.1} parent=1 // pred_check
      _
    $region3: #{tpu_custom_call.1} parent=1 // pred_check_branch
      %14 = sbr.rel (0) target = $region5
    $region4: #{tpu_custom_call.1} parent=1 // pred_region
      %s16 = ssub.s32 128, 128
      %17 = vsyncadd [#allocation3], %s16
      %s19 = sshll.u32 [#allocation2], 4
      %s20 = int_to_ptr.vmem [resolvable:$true] %s19
      %22 = dma.hbm_to_vmem [thread:$0]  %s0, 128, %s20, [#allocation3]
    $region5: #{tpu_custom_call.1} parent=1 // pred_fallthru
      _
    // Predicated region
    $region6: #{tpu_custom_call.1} parent=1 // pred_check
      _
    $region7: #{tpu_custom_call.1} parent=1 // pred_check_branch
      %24 = sbr.rel (0) target = $region9
    $region8: #{tpu_custom_call.1} parent=1 // pred_region
      %s26 = ssub.s32 4096, 4096
      %27 = vsyncadd [#allocation6], %s26
      %s28 = sshll.u32 [#allocation5], 4
      %s29 = int_to_ptr.vmem [resolvable:$true] %s28
      %34 = dma.hbm_to_vmem [thread:$0]  %s1, 4096, %s29, [#allocation6], 256, 256, 16
    $region9: #{tpu_custom_call.1} parent=1 // pred_fallthru
      _
    // Predicated region
    $region10: #{tpu_custom_call.1} parent=1 // pred_check
      _
    $region11: #{tpu_custom_call.1} parent=1 // pred_check_branch
      %36 = sbr.rel (0) target = $region13
    $region12: #{tpu_custom_call.1} parent=1 // pred_region
      %37 = dma.done [#allocation3], 128
    $region13: #{tpu_custom_call.1} parent=1 // pred_fallthru
      _
    // Predicated region
    $region14: #{tpu_custom_call.1} parent=1 // pred_check
      _
    $region15: #{tpu_custom_call.1} parent=1 // pred_check_branch
      %39 = sbr.rel (0) target = $region17
    $region16: #{tpu_custom_call.1} parent=1 // pred_region
      %40 = dma.done [#allocation6], 4096
    $region17: #{tpu_custom_call.1} parent=1 // pred_fallthru
      _
    %v41 = vld [vmem:[#allocation2] sm:$0xff]
    %v42 = vmul.f32 %v41, %v41
    %vm43 = vcmask 523264
    %v44 = vsel %vm43, %v42, 0.0
    %45 = vadd.xlane.f32.xlu0 %v44
    %v46 = vpop.xlane.xlu0 %45
    %v47 = vmax.f32 %v46, 1e-24
    %v48 = vrsqrt.pop %v47
    %v49 = vmul.f32 %v41, %v48
    %v50 = vld [vmem:[#allocation5] sm:$0xff]
    %v51 = vld [vmem:[#allocation5 + $0x8] sm:$0xff]
    %v52 = vld [vmem:[#allocation5 + $0x10] sm:$0xff]
    %v53 = vld [vmem:[#allocation5 + $0x18] sm:$0xff]
    %v54 = vld [vmem:[#allocation5 + $0x20] sm:$0xff]
    %v55 = vld [vmem:[#allocation5 + $0x28] sm:$0xff]
    %v56 = vld [vmem:[#allocation5 + $0x30] sm:$0xff]
    %v57 = vld [vmem:[#allocation5 + $0x38] sm:$0xff]
    %v58 = vld [vmem:[#allocation5 + $0x40] sm:$0xff]
    %v59 = vld [vmem:[#allocation5 + $0x48] sm:$0xff]
    %v60 = vld [vmem:[#allocation5 + $0x50] sm:$0xff]
    %v61 = vld [vmem:[#allocation5 + $0x58] sm:$0xff]
    %v62 = vld [vmem:[#allocation5 + $0x60] sm:$0xff]
    %v63 = vld [vmem:[#allocation5 + $0x68] sm:$0xff]
    %v64 = vld [vmem:[#allocation5 + $0x70] sm:$0xff]
    %v65 = vld [vmem:[#allocation5 + $0x78] sm:$0xff]
    %v67 = vsel %vm43, %v49, 0
    %69 = vmatprep.subr.mxu0 0.0
    %70 = vmatpush1.msra.mxu0 0.0
    %71 = vmatprep.subr.mxu0 0.0
    %72 = vmatpush1.msra.mxu0 0.0
    %73 = vmatprep.subr.mxu0 0.0
    %74 = vmatpush1.msra.mxu0 0.0
    %75 = vmatprep.subr.mxu0 0.0
    %76 = vmatpush1.msra.mxu0 0.0
    %77 = vmatprep.subr.mxu0 0.0
    %78 = vmatpush1.msra.mxu0 0.0
    %79 = vmatprep.subr.mxu0 0.0
    %80 = vmatpush1.msra.mxu0 0.0
    %81 = vmatprep.subr.mxu0 0.0
    %82 = vmatpush1.msra.mxu0 0.0
    %83 = vmatprep.subr.mxu0 0.0
    %84 = vmatpush1.msra.mxu0 0.0
    %85 = vmatprep.subr.mxu0 %v65
    %86 = vmatpush1.msra.mxu0 %v64
    %87 = vmatprep.subr.mxu0 %v63
    %88 = vmatpush1.msra.mxu0 %v62
    %89 = vmatprep.subr.mxu0 %v61
    %90 = vmatpush1.msra.mxu0 %v60
    %91 = vmatprep.subr.mxu0 %v59
    %92 = vmatpush1.msra.mxu0 %v58
    %93 = vmatprep.subr.mxu0 %v57
    %94 = vmatpush1.msra.mxu0 %v56
    %95 = vmatprep.subr.mxu0 %v55
    %96 = vmatpush1.msra.mxu0 %v54
    %97 = vmatprep.subr.mxu0 %v53
    %98 = vmatpush1.msra.mxu0 %v52
    %99 = vmatprep.subr.mxu0 %v51
    %100 = vmatpush1.msra.mxu0 %v50
    %101 = vmatprep.subr.mxu0 0.0
    %102 = vmatpush2.msra.mxu0 0.0
    %103 = vmatprep.subr.mxu0 0.0
    %104 = vmatpush2.msra.mxu0 0.0
    %105 = vmatprep.subr.mxu0 0.0
    %106 = vmatpush2.msra.mxu0 0.0
    %107 = vmatprep.subr.mxu0 0.0
    %108 = vmatpush2.msra.mxu0 0.0
    %109 = vmatprep.subr.mxu0 0.0
    %110 = vmatpush2.msra.mxu0 0.0
    %111 = vmatprep.subr.mxu0 0.0
    %112 = vmatpush2.msra.mxu0 0.0
    %113 = vmatprep.subr.mxu0 0.0
    %114 = vmatpush2.msra.mxu0 0.0
    %115 = vmatprep.subr.mxu0 0.0
    %116 = vmatpush2.msra.mxu0 0.0
    %117 = vmatprep.subr.mxu0 0.0
    %118 = vmatpush2.msra.mxu0 0.0
    %119 = vmatprep.subr.mxu0 0.0
    %120 = vmatpush2.msra.mxu0 0.0
    %121 = vmatprep.subr.mxu0 0.0
    %122 = vmatpush2.msra.mxu0 0.0
    %123 = vmatprep.subr.mxu0 0.0
    %124 = vmatpush2.msra.mxu0 0.0
    %125 = vmatprep.subr.mxu0 0.0
    %126 = vmatpush2.msra.mxu0 0.0
    %127 = vmatprep.subr.mxu0 0.0
    %128 = vmatpush2.msra.mxu0 0.0
    %129 = vmatprep.subr.mxu0 0.0
    %130 = vmatpush2.msra.mxu0 0.0
    %131 = vmatprep.subr.mxu0 0.0
    %132 = vmatpush2.msra.mxu0 0.0
    %133 = vmatprep.mubr.f32.mxu0 0.0
    %134 = vmatmul.mubr.f32.gmra.mxu0 %v67
    %v135 = vpop.f32.mrf.mxu0
    %v136 = vadd.f32 0.0, %v135
    %v137 = vpop.f32.mrf.mxu0
    %v138 = vadd.f32 0.0, %v137
    %139 = vdwg.mxu0
    %v140 = vmul.f32 %v50, %v50
    %v141 = vmul.f32 %v51, %v51
    %v142 = vmul.f32 %v52, %v52
    %v143 = vmul.f32 %v53, %v53
    %v144 = vmul.f32 %v54, %v54
    %v145 = vmul.f32 %v55, %v55
    %v146 = vmul.f32 %v56, %v56
    %v147 = vmul.f32 %v57, %v57
    %v148 = vmul.f32 %v58, %v58
    %v149 = vmul.f32 %v59, %v59
    %v150 = vmul.f32 %v60, %v60
    %v151 = vmul.f32 %v61, %v61
    %v152 = vmul.f32 %v62, %v62
    %v153 = vmul.f32 %v63, %v63
    %v154 = vmul.f32 %v64, %v64
    %v155 = vmul.f32 %v65, %v65
    %v156 = vadd.f32 %v140, %v142
    %v157 = vadd.f32 %v156, %v144
    %v158 = vadd.f32 %v157, %v146
    %v159 = vadd.f32 %v158, %v148
    %v160 = vadd.f32 %v159, %v150
    %v161 = vadd.f32 %v160, %v152
    %v162 = vadd.f32 %v161, %v154
    %v163 = vrot.slane %v162, 4
    %v164 = vadd.f32 %v162, %v163
    %v165 = vrot.slane %v164, 2
    %v166 = vadd.f32 %v164, %v165
    %v167 = vrot.slane %v166, 1
    %v168 = vadd.f32 %v166, %v167
    %v169 = vadd.f32 %v141, %v143
    %v170 = vadd.f32 %v169, %v145
    %v171 = vadd.f32 %v170, %v147
    %v172 = vadd.f32 %v171, %v149
    %v173 = vadd.f32 %v172, %v151
    %v174 = vadd.f32 %v173, %v153
    %v175 = vadd.f32 %v174, %v155
    %v176 = vrot.slane %v175, 4
    %v177 = vadd.f32 %v175, %v176
    %v178 = vrot.slane %v177, 2
    %v179 = vadd.f32 %v177, %v178
    %v180 = vrot.slane %v179, 1
    %v181 = vadd.f32 %v179, %v180
    %v182 = vmax.f32 %v168, 1e-24
    %v183 = vmax.f32 %v181, 1e-24
    %v184 = vrsqrt.pop %v182
    %v185 = vrsqrt.pop %v183
    %v186 = vmul.f32 %v136, %v184
    %v187 = vmul.f32 %v138, %v185
    %v188 = vmul.f32 %v186, 14.285714
    %v189 = vmul.f32 %v187, 14.285714
    %v190 = vrot.slane %v188, 4
    %v191 = vmax.f32 %v188, %v190
    %v192 = vrot.slane %v191, 2
    %v193 = vmax.f32 %v191, %v192
    %v194 = vrot.slane %v193, 1
    %v195 = vmax.f32 %v193, %v194
    %v196 = vrot.slane %v189, 4
    %v197 = vmax.f32 %v189, %v196
    %v198 = vrot.slane %v197, 2
    %v199 = vmax.f32 %v197, %v198
    %v200 = vrot.slane %v199, 1
    %v201 = vmax.f32 %v199, %v200
    %v202 = vsub.f32 %v188, %v195
    %v203 = vsub.f32 %v189, %v201
    %v204 = vmul.f32 %v202, 1.442695
    %v205 = vpow.pop %v204
    %v206 = vmul.f32 %v203, 1.442695
    %v207 = vpow.pop %v206
    %v208 = vrot.slane %v205, 4
    %v209 = vadd.f32 %v205, %v208
    %v210 = vrot.slane %v209, 2
    %v211 = vadd.f32 %v209, %v210
    %v212 = vrot.slane %v211, 1
    %v213 = vadd.f32 %v211, %v212
    %v214 = vrot.slane %v207, 4
    %v215 = vadd.f32 %v207, %v214
    %v216 = vrot.slane %v215, 2
    %v217 = vadd.f32 %v215, %v216
    %v218 = vrot.slane %v217, 1
    %v219 = vadd.f32 %v217, %v218
    %v220 = vrcp.pop %v213
    %v221 = vmul.f32 %v205, %v220
    %v222 = vrcp.pop %v219
    %v223 = vmul.f32 %v207, %v222
    %v224 = vadd.f32 %v221, 1e-06
    %v225 = vadd.f32 %v223, 1e-06
    %v226 = vadd.f32 %v224, %v225
    %227 = vadd.xlane.f32.xlu0 %v226
    %v228 = vpop.xlane.xlu0 %227
    %v229 = vrcp.pop %v228
    %v230 = vmul.f32 %v224, %v229
    %v231 = vmul.f32 %v225, %v229
    %232 = vmatprep.subr.mxu0 0.0
    %233 = vmatpush1.xpose.msra.mxu0 0.0
    %234 = vmatprep.subr.mxu0 0.0
    %235 = vmatpush1.xpose.msra.mxu0 0.0
    %236 = vmatprep.subr.mxu0 0.0
    %237 = vmatpush1.xpose.msra.mxu0 0.0
    %238 = vmatprep.subr.mxu0 0.0
    %239 = vmatpush1.xpose.msra.mxu0 0.0
    %240 = vmatprep.subr.mxu0 0.0
    %241 = vmatpush1.xpose.msra.mxu0 0.0
    %242 = vmatprep.subr.mxu0 0.0
    %243 = vmatpush1.xpose.msra.mxu0 0.0
    %244 = vmatprep.subr.mxu0 0.0
    %245 = vmatpush1.xpose.msra.mxu0 0.0
    %246 = vmatprep.subr.mxu0 0.0
    %247 = vmatpush1.xpose.msra.mxu0 0.0
    %248 = vmatprep.subr.mxu0 %v65
    %249 = vmatpush1.xpose.msra.mxu0 %v64
    %250 = vmatprep.subr.mxu0 %v63
    %251 = vmatpush1.xpose.msra.mxu0 %v62
    %252 = vmatprep.subr.mxu0 %v61
    %253 = vmatpush1.xpose.msra.mxu0 %v60
    %254 = vmatprep.subr.mxu0 %v59
    %255 = vmatpush1.xpose.msra.mxu0 %v58
    %256 = vmatprep.subr.mxu0 %v57
    %257 = vmatpush1.xpose.msra.mxu0 %v56
    %258 = vmatprep.subr.mxu0 %v55
    %259 = vmatpush1.xpose.msra.mxu0 %v54
    %260 = vmatprep.subr.mxu0 %v53
    %261 = vmatpush1.xpose.msra.mxu0 %v52
    %262 = vmatprep.subr.mxu0 %v51
    %263 = vmatpush1.xpose.msra.mxu0 %v50
    %264 = vmatprep.subr.mxu0 0.0
    %265 = vmatpush2.xpose.msra.mxu0 0.0
    %266 = vmatprep.subr.mxu0 0.0
    %267 = vmatpush2.xpose.msra.mxu0 0.0
    %268 = vmatprep.subr.mxu0 0.0
    %269 = vmatpush2.xpose.msra.mxu0 0.0
    %270 = vmatprep.subr.mxu0 0.0
    %271 = vmatpush2.xpose.msra.mxu0 0.0
    %272 = vmatprep.subr.mxu0 0.0
    %273 = vmatpush2.xpose.msra.mxu0 0.0
    %274 = vmatprep.subr.mxu0 0.0
    %275 = vmatpush2.xpose.msra.mxu0 0.0
    %276 = vmatprep.subr.mxu0 0.0
    %277 = vmatpush2.xpose.msra.mxu0 0.0
    %278 = vmatprep.subr.mxu0 0.0
    %279 = vmatpush2.xpose.msra.mxu0 0.0
    %280 = vmatprep.subr.mxu0 0.0
    %281 = vmatpush2.xpose.msra.mxu0 0.0
    %282 = vmatprep.subr.mxu0 0.0
    %283 = vmatpush2.xpose.msra.mxu0 0.0
    %284 = vmatprep.subr.mxu0 0.0
    %285 = vmatpush2.xpose.msra.mxu0 0.0
    %286 = vmatprep.subr.mxu0 0.0
    %287 = vmatpush2.xpose.msra.mxu0 0.0
    %288 = vmatprep.subr.mxu0 0.0
    %289 = vmatpush2.xpose.msra.mxu0 0.0
    %290 = vmatprep.subr.mxu0 0.0
    %291 = vmatpush2.xpose.msra.mxu0 0.0
    %292 = vmatprep.subr.mxu0 0.0
    %293 = vmatpush2.xpose.msra.mxu0 0.0
    %294 = vmatprep.subr.mxu0 0.0
    %295 = vmatpush2.xpose.msra.mxu0 0.0
    %296 = vmatprep.mubr.f32.mxu0 %v231
    %297 = vmatmul.mubr.f32.gmra.mxu0 %v230
    %v298 = vpop.f32.mrf.mxu0
    %v299 = vadd.f32 0.0, %v298
    %v300 = vpop.f32.mrf.mxu0
    %301 = vdwg.mxu0
    %302 = vst [vmem:[#allocation8] sm:$0xff] %v186
    %303 = vst [vmem:[#allocation8 + $0x8] sm:$0xff] %v187
    %304 = vst.msk [vmem:[#allocation7] sm:$0xff] %vm43, %v299
    %s305 = scalar_lea.vmem [#allocation5], 128
    %v306 = vld [vmem:[%s305] sm:$0xff]
    %v307 = vld [vmem:[%s305 + $0x8] sm:$0xff]
    %v308 = vld [vmem:[%s305 + $0x10] sm:$0xff]
    %v309 = vld [vmem:[%s305 + $0x18] sm:$0xff]
    %v310 = vld [vmem:[%s305 + $0x20] sm:$0xff]
    %v311 = vld [vmem:[%s305 + $0x28] sm:$0xff]
    %v312 = vld [vmem:[%s305 + $0x30] sm:$0xff]
    %v313 = vld [vmem:[%s305 + $0x38] sm:$0xff]
    %v314 = vld [vmem:[%s305 + $0x40] sm:$0xff]
    %v315 = vld [vmem:[%s305 + $0x48] sm:$0xff]
    %v316 = vld [vmem:[%s305 + $0x50] sm:$0xff]
    %v317 = vld [vmem:[%s305 + $0x58] sm:$0xff]
    %v318 = vld [vmem:[%s305 + $0x60] sm:$0xff]
    %v319 = vld [vmem:[%s305 + $0x68] sm:$0xff]
    %v320 = vld [vmem:[%s305 + $0x70] sm:$0xff]
    %v321 = vld [vmem:[%s305 + $0x78] sm:$0xff]
    %322 = vmatprep.subr.mxu0 0.0
    %323 = vmatpush1.msra.mxu0 0.0
    %324 = vmatprep.subr.mxu0 0.0
    %325 = vmatpush1.msra.mxu0 0.0
    %326 = vmatprep.subr.mxu0 0.0
    %327 = vmatpush1.msra.mxu0 0.0
    %328 = vmatprep.subr.mxu0 0.0
    %329 = vmatpush1.msra.mxu0 0.0
    %330 = vmatprep.subr.mxu0 0.0
    %331 = vmatpush1.msra.mxu0 0.0
    %332 = vmatprep.subr.mxu0 0.0
    %333 = vmatpush1.msra.mxu0 0.0
    %334 = vmatprep.subr.mxu0 0.0
    %335 = vmatpush1.msra.mxu0 0.0
    %336 = vmatprep.subr.mxu0 0.0
    %337 = vmatpush1.msra.mxu0 0.0
    %338 = vmatprep.subr.mxu0 %v321
    %339 = vmatpush1.msra.mxu0 %v320
    %340 = vmatprep.subr.mxu0 %v319
    %341 = vmatpush1.msra.mxu0 %v318
    %342 = vmatprep.subr.mxu0 %v317
    %343 = vmatpush1.msra.mxu0 %v316
    %344 = vmatprep.subr.mxu0 %v315
    %345 = vmatpush1.msra.mxu0 %v314
    %346 = vmatprep.subr.mxu0 %v313
    %347 = vmatpush1.msra.mxu0 %v312
    %348 = vmatprep.subr.mxu0 %v311
    %349 = vmatpush1.msra.mxu0 %v310
    %350 = vmatprep.subr.mxu0 %v309
    %351 = vmatpush1.msra.mxu0 %v308
    %352 = vmatprep.subr.mxu0 %v307
    %353 = vmatpush1.msra.mxu0 %v306
    %354 = vmatprep.subr.mxu0 0.0
    %355 = vmatpush2.msra.mxu0 0.0
    %356 = vmatprep.subr.mxu0 0.0
    %357 = vmatpush2.msra.mxu0 0.0
    %358 = vmatprep.subr.mxu0 0.0
    %359 = vmatpush2.msra.mxu0 0.0
    %360 = vmatprep.subr.mxu0 0.0
    %361 = vmatpush2.msra.mxu0 0.0
    %362 = vmatprep.subr.mxu0 0.0
    %363 = vmatpush2.msra.mxu0 0.0
    %364 = vmatprep.subr.mxu0 0.0
    %365 = vmatpush2.msra.mxu0 0.0
    %366 = vmatprep.subr.mxu0 0.0
    %367 = vmatpush2.msra.mxu0 0.0
    %368 = vmatprep.subr.mxu0 0.0
    %369 = vmatpush2.msra.mxu0 0.0
    %370 = vmatprep.subr.mxu0 0.0
    %371 = vmatpush2.msra.mxu0 0.0
    %372 = vmatprep.subr.mxu0 0.0
    %373 = vmatpush2.msra.mxu0 0.0
    %374 = vmatprep.subr.mxu0 0.0
    %375 = vmatpush2.msra.mxu0 0.0
    %376 = vmatprep.subr.mxu0 0.0
    %377 = vmatpush2.msra.mxu0 0.0
    %378 = vmatprep.subr.mxu0 0.0
    %379 = vmatpush2.msra.mxu0 0.0
    %380 = vmatprep.subr.mxu0 0.0
    %381 = vmatpush2.msra.mxu0 0.0
    %382 = vmatprep.subr.mxu0 0.0
    %383 = vmatpush2.msra.mxu0 0.0
    %384 = vmatprep.subr.mxu0 0.0
    %385 = vmatpush2.msra.mxu0 0.0
    %386 = vmatprep.mubr.f32.mxu0 0.0
    %387 = vmatmul.mubr.f32.gmra.mxu0 %v67
    %v388 = vpop.f32.mrf.mxu0
    %v389 = vadd.f32 0.0, %v388
    %v390 = vpop.f32.mrf.mxu0
    %v391 = vadd.f32 0.0, %v390
    %392 = vdwg.mxu0
    %v393 = vmul.f32 %v306, %v306
    %v394 = vmul.f32 %v307, %v307
    %v395 = vmul.f32 %v308, %v308
    %v396 = vmul.f32 %v309, %v309
    %v397 = vmul.f32 %v310, %v310
    %v398 = vmul.f32 %v311, %v311
    %v399 = vmul.f32 %v312, %v312
    %v400 = vmul.f32 %v313, %v313
    %v401 = vmul.f32 %v314, %v314
    %v402 = vmul.f32 %v315, %v315
    %v403 = vmul.f32 %v316, %v316
    %v404 = vmul.f32 %v317, %v317
    %v405 = vmul.f32 %v318, %v318
    %v406 = vmul.f32 %v319, %v319
    %v407 = vmul.f32 %v320, %v320
    %v408 = vmul.f32 %v321, %v321
    %v409 = vadd.f32 %v393, %v395
    %v410 = vadd.f32 %v409, %v397
    %v411 = vadd.f32 %v410, %v399
    %v412 = vadd.f32 %v411, %v401
    %v413 = vadd.f32 %v412, %v403
    %v414 = vadd.f32 %v413, %v405
    %v415 = vadd.f32 %v414, %v407
    %v416 = vrot.slane %v415, 4
    %v417 = vadd.f32 %v415, %v416
    %v418 = vrot.slane %v417, 2
    %v419 = vadd.f32 %v417, %v418
    %v420 = vrot.slane %v419, 1
    %v421 = vadd.f32 %v419, %v420
    %v422 = vadd.f32 %v394, %v396
    %v423 = vadd.f32 %v422, %v398
    %v424 = vadd.f32 %v423, %v400
    %v425 = vadd.f32 %v424, %v402
    %v426 = vadd.f32 %v425, %v404
    %v427 = vadd.f32 %v426, %v406
    %v428 = vadd.f32 %v427, %v408
    %v429 = vrot.slane %v428, 4
    %v430 = vadd.f32 %v428, %v429
    %v431 = vrot.slane %v430, 2
    %v432 = vadd.f32 %v430, %v431
    %v433 = vrot.slane %v432, 1
    %v434 = vadd.f32 %v432, %v433
    %v435 = vmax.f32 %v421, 1e-24
    %v436 = vmax.f32 %v434, 1e-24
    %v437 = vrsqrt.pop %v435
    %v438 = vrsqrt.pop %v436
    %v439 = vmul.f32 %v389, %v437
    %v440 = vmul.f32 %v391, %v438
    %v441 = vmul.f32 %v439, 14.285714
    %v442 = vmul.f32 %v440, 14.285714
    %v443 = vrot.slane %v441, 4
    %v444 = vmax.f32 %v441, %v443
    %v445 = vrot.slane %v444, 2
    %v446 = vmax.f32 %v444, %v445
    %v447 = vrot.slane %v446, 1
    %v448 = vmax.f32 %v446, %v447
    %v449 = vrot.slane %v442, 4
    %v450 = vmax.f32 %v442, %v449
    %v451 = vrot.slane %v450, 2
    %v452 = vmax.f32 %v450, %v451
    %v453 = vrot.slane %v452, 1
    %v454 = vmax.f32 %v452, %v453
    %v455 = vsub.f32 %v441, %v448
    %v456 = vsub.f32 %v442, %v454
    %v457 = vmul.f32 %v455, 1.442695
    %v458 = vpow.pop %v457
    %v459 = vmul.f32 %v456, 1.442695
    %v460 = vpow.pop %v459
    %v461 = vrot.slane %v458, 4
    %v462 = vadd.f32 %v458, %v461
    %v463 = vrot.slane %v462, 2
    %v464 = vadd.f32 %v462, %v463
    %v465 = vrot.slane %v464, 1
    %v466 = vadd.f32 %v464, %v465
    %v467 = vrot.slane %v460, 4
    %v468 = vadd.f32 %v460, %v467
    %v469 = vrot.slane %v468, 2
    %v470 = vadd.f32 %v468, %v469
    %v471 = vrot.slane %v470, 1
    %v472 = vadd.f32 %v470, %v471
    %v473 = vrcp.pop %v466
    %v474 = vmul.f32 %v458, %v473
    %v475 = vrcp.pop %v472
    %v476 = vmul.f32 %v460, %v475
    %v477 = vadd.f32 %v474, 1e-06
    %v478 = vadd.f32 %v476, 1e-06
    %v479 = vadd.f32 %v477, %v478
    %480 = vadd.xlane.f32.xlu0 %v479
    %v481 = vpop.xlane.xlu0 %480
    %v482 = vrcp.pop %v481
    %v483 = vmul.f32 %v477, %v482
    %v484 = vmul.f32 %v478, %v482
    %485 = vmatprep.subr.mxu0 0.0
    %486 = vmatpush1.xpose.msra.mxu0 0.0
    %487 = vmatprep.subr.mxu0 0.0
    %488 = vmatpush1.xpose.msra.mxu0 0.0
    %489 = vmatprep.subr.mxu0 0.0
    %490 = vmatpush1.xpose.msra.mxu0 0.0
    %491 = vmatprep.subr.mxu0 0.0
    %492 = vmatpush1.xpose.msra.mxu0 0.0
    %493 = vmatprep.subr.mxu0 0.0
    %494 = vmatpush1.xpose.msra.mxu0 0.0
    %495 = vmatprep.subr.mxu0 0.0
    %496 = vmatpush1.xpose.msra.mxu0 0.0
    %497 = vmatprep.subr.mxu0 0.0
    %498 = vmatpush1.xpose.msra.mxu0 0.0
    %499 = vmatprep.subr.mxu0 0.0
    %500 = vmatpush1.xpose.msra.mxu0 0.0
    %501 = vmatprep.subr.mxu0 %v321
    %502 = vmatpush1.xpose.msra.mxu0 %v320
    %503 = vmatprep.subr.mxu0 %v319
    %504 = vmatpush1.xpose.msra.mxu0 %v318
    %505 = vmatprep.subr.mxu0 %v317
    %506 = vmatpush1.xpose.msra.mxu0 %v316
    %507 = vmatprep.subr.mxu0 %v315
    %508 = vmatpush1.xpose.msra.mxu0 %v314
    %509 = vmatprep.subr.mxu0 %v313
    %510 = vmatpush1.xpose.msra.mxu0 %v312
    %511 = vmatprep.subr.mxu0 %v311
    %512 = vmatpush1.xpose.msra.mxu0 %v310
    %513 = vmatprep.subr.mxu0 %v309
    %514 = vmatpush1.xpose.msra.mxu0 %v308
    %515 = vmatprep.subr.mxu0 %v307
    %516 = vmatpush1.xpose.msra.mxu0 %v306
    %517 = vmatprep.subr.mxu0 0.0
    %518 = vmatpush2.xpose.msra.mxu0 0.0
    %519 = vmatprep.subr.mxu0 0.0
    %520 = vmatpush2.xpose.msra.mxu0 0.0
    %521 = vmatprep.subr.mxu0 0.0
    %522 = vmatpush2.xpose.msra.mxu0 0.0
    %523 = vmatprep.subr.mxu0 0.0
    %524 = vmatpush2.xpose.msra.mxu0 0.0
    %525 = vmatprep.subr.mxu0 0.0
    %526 = vmatpush2.xpose.msra.mxu0 0.0
    %527 = vmatprep.subr.mxu0 0.0
    %528 = vmatpush2.xpose.msra.mxu0 0.0
    %529 = vmatprep.subr.mxu0 0.0
    %530 = vmatpush2.xpose.msra.mxu0 0.0
    %531 = vmatprep.subr.mxu0 0.0
    %532 = vmatpush2.xpose.msra.mxu0 0.0
    %533 = vmatprep.subr.mxu0 0.0
    %534 = vmatpush2.xpose.msra.mxu0 0.0
    %535 = vmatprep.subr.mxu0 0.0
    %536 = vmatpush2.xpose.msra.mxu0 0.0
    %537 = vmatprep.subr.mxu0 0.0
    %538 = vmatpush2.xpose.msra.mxu0 0.0
    %539 = vmatprep.subr.mxu0 0.0
    %540 = vmatpush2.xpose.msra.mxu0 0.0
    %541 = vmatprep.subr.mxu0 0.0
    %542 = vmatpush2.xpose.msra.mxu0 0.0
    %543 = vmatprep.subr.mxu0 0.0
    %544 = vmatpush2.xpose.msra.mxu0 0.0
    %545 = vmatprep.subr.mxu0 0.0
    %546 = vmatpush2.xpose.msra.mxu0 0.0
    %547 = vmatprep.subr.mxu0 0.0
    %548 = vmatpush2.xpose.msra.mxu0 0.0
    %549 = vmatprep.mubr.f32.mxu0 %v484
    %550 = vmatmul.mubr.f32.gmra.mxu0 %v483
    %v551 = vpop.f32.mrf.mxu0
    %v552 = vadd.f32 0.0, %v551
    %v553 = vpop.f32.mrf.mxu0
    %554 = vdwg.mxu0
    %s555 = scalar_lea.vmem [#allocation8], 16
    %556 = vst [vmem:[%s555] sm:$0xff] %v439
    %557 = vst [vmem:[%s555 + $0x8] sm:$0xff] %v440
    %s558 = scalar_lea.vmem [#allocation7], 8
    %559 = vst.msk [vmem:[%s558] sm:$0xff] %vm43, %v552
    // Predicated region
    $region18: #{tpu_custom_call.1} parent=1 // pred_check
      _
    $region19: #{tpu_custom_call.1} parent=1 // pred_check_branch
      %561 = sbr.rel (0) target = $region21
    $region20: #{tpu_custom_call.1} parent=1 // pred_region
      %s563 = ssub.s32 256, 256
      %564 = vsyncadd [#allocation4], %s563
      %s565 = sshll.u32 [#allocation7], 4
      %s566 = int_to_ptr.vmem [resolvable:$true] %s565
      %571 = dma.vmem_to_hbm [thread:$0]  %s566, 256, %s2, [#allocation4], 128, 128, 8
    $region21: #{tpu_custom_call.1} parent=1 // pred_fallthru
      _
    // Predicated region
    $region22: #{tpu_custom_call.1} parent=1 // pred_check
      _
    $region23: #{tpu_custom_call.1} parent=1 // pred_check_branch
      %573 = sbr.rel (0) target = $region25
    $region24: #{tpu_custom_call.1} parent=1 // pred_region
      %s575 = ssub.s32 512, 512
      %576 = vsyncadd [#allocation9], %s575
      %s577 = sshll.u32 [#allocation8], 4
      %s578 = int_to_ptr.vmem [resolvable:$true] %s577
      %583 = dma.vmem_to_hbm [thread:$0]  %s578, 512, %s3, [#allocation9], 256, 256, 16
    $region25: #{tpu_custom_call.1} parent=1 // pred_fallthru
      _
    // Predicated region
    $region26: #{tpu_custom_call.1} parent=1 // pred_check
      _
    $region27: #{tpu_custom_call.1} parent=1 // pred_check_branch
      %585 = sbr.rel (0) target = $region29
    $region28: #{tpu_custom_call.1} parent=1 // pred_region
      %586 = dma.done [#allocation4], 256
    $region29: #{tpu_custom_call.1} parent=1 // pred_fallthru
      _
    // Predicated region
    $region30: #{tpu_custom_call.1} parent=1 // pred_check
      _
    $region31: #{tpu_custom_call.1} parent=1 // pred_check_branch
      %588 = sbr.rel (0) target = $region33
    $region32: #{tpu_custom_call.1} parent=1 // pred_region
      %589 = dma.done [#allocation9], 512
    $region33: #{tpu_custom_call.1} parent=1 // pred_fallthru
      _
    %590 = vsyncpa [#allocation3], 1
    %591 = vsyncpa [#allocation6], 1
    %592 = vsyncpa [#allocation4], 1
    %593 = vsyncpa [#allocation9], 1

</llo_original>
